<compile_context>
chip_gen: v7x
topology: tpu7x:2x2x1
jax: 0.10.0
libtpu: 0.0.40
codegen_flags: <defaults>
</compile_context>

<pallas_src>
import math

import jax
import jax.numpy as jnp
from jax.experimental import pallas as pl
from jax.experimental.pallas import tpu as pltpu


def _lora_qkv_kernel(scale_ref, x_ref, w_ref, a_ref, b_ref, qkv_ref):
    x = x_ref[...]                       # (tile_n, D) bf16 token tile
    s = scale_ref[0, 0]                  # f32 ParameterWrapper scale

    # Fused frozen base projection: one wide MXU pass -> (tile_n, 3D) f32.
    base = jnp.dot(x, w_ref[...], preferred_element_type=jnp.float32)

    # Packed low-rank path: p = x @ [A_q^T | A_v^T] -> (tile_n, 2r);
    # delta = p @ B_packed (block-sparse, K columns are zero) -> (tile_n, 3D).
    p = jnp.dot(x, a_ref[...], preferred_element_type=jnp.float32)
    delta = jnp.dot(p, b_ref[...].astype(jnp.float32),
                    preferred_element_type=jnp.float32)

    # Single lane-dense store of the full [q | k | v] tile.
    qkv_ref[...] = (base + s * delta).astype(qkv_ref.dtype)


def _round_up(x, m):
    return ((x + m - 1) // m) * m


def lora_qkv_forward(x, params, *, tile_n=256):
    """x: (B, S, D) -> qkv: (B, S, 3*D) laid out as [q | k | v], f32."""
    B, S, D = x.shape
    N = B * S
    w_qkv3 = params["w_qkv3"]            # (D, 3D) bf16
    a2 = params["a2"]                    # (D, 2r) bf16
    b2 = params["b2"]                    # (2r, 3D) bf16 (block-sparse)
    D3 = w_qkv3.shape[1]
    r2 = a2.shape[1]

    # Clamp the tile for tiny inputs, then pad tokens up to a full tile
    # (never collapse to a single oversized tile).
    tile_n = max(8, min(tile_n, _round_up(N, 8)))
    n_pad = _round_up(N, tile_n)

    x2 = x.reshape(N, D).astype(w_qkv3.dtype)
    if n_pad != N:
        x2 = jnp.pad(x2, ((0, n_pad - N), (0, 0)))

    scale = jnp.asarray(params["scale"], jnp.float32).reshape(1, 1)

    tok_in = pl.BlockSpec((tile_n, D), lambda i: (i, 0))
    tok_out = pl.BlockSpec((tile_n, D3), lambda i: (i, 0))
    w_spec = pl.BlockSpec((D, D3), lambda i: (0, 0))
    a_spec = pl.BlockSpec((D, r2), lambda i: (0, 0))
    b_spec = pl.BlockSpec((r2, D3), lambda i: (0, 0))

    qkv = pl.pallas_call(
        _lora_qkv_kernel,
        out_shape=jax.ShapeDtypeStruct((n_pad, D3), jnp.float32),
        grid_spec=pltpu.PrefetchScalarGridSpec(
            num_scalar_prefetch=0,
            grid=(n_pad // tile_n,),
            in_specs=[
                pl.BlockSpec(memory_space=pltpu.MemorySpace.SMEM),  # scale
                tok_in,                                             # x tile
                w_spec,                                             # packed W_qkv
                a_spec,                                             # packed LoRA A
                b_spec,                                             # packed LoRA B
            ],
            out_specs=tok_out,
        ),
        compiler_params=pltpu.CompilerParams(
            dimension_semantics=("parallel",),
            vmem_limit_bytes=64 * 1024 * 1024,
        ),
    )(scale, x2, w_qkv3, a2, b2)

    return qkv[:N].reshape(B, S, D3)


def init_params(key, dim, rank, *, nonzero_b=False, dtype=jnp.bfloat16):
    kqkv, kaq, kav, kbq, kbv = jax.random.split(key, 5)
    # Frozen base qkv linear, PyTorch layout (3*dim, dim), default Linear init.
    bound = 1.0 / math.sqrt(dim)
    w_qkv = jax.random.uniform(kqkv, (3 * dim, dim), jnp.float32, -bound, bound)
    # LoRA A: kaiming_uniform_(a=sqrt(5)) -> U(-1/sqrt(fan_in), 1/sqrt(fan_in)).
    a_q = jax.random.uniform(kaq, (rank, dim), jnp.float32, -bound, bound)
    a_v = jax.random.uniform(kav, (rank, dim), jnp.float32, -bound, bound)
    # LoRA B: zero-initialized by the module; optionally nonzero so the
    # low-rank path of the kernel is actually exercised in the test.
    if nonzero_b:
        b_q = 0.05 * jax.random.normal(kbq, (dim, rank), jnp.float32)
        b_v = 0.05 * jax.random.normal(kbv, (dim, rank), jnp.float32)
    else:
        b_q = jnp.zeros((dim, rank), jnp.float32)
        b_v = jnp.zeros((dim, rank), jnp.float32)

    # Offline packing (frozen weights; one-time transform).
    w_qkv3 = w_qkv.T                                 # (D, 3D) = [Wq^T|Wk^T|Wv^T]
    a2 = jnp.concatenate([a_q.T, a_v.T], axis=1)     # (D, 2r)
    b2 = jnp.zeros((2 * rank, 3 * dim), jnp.float32)
    b2 = b2.at[:rank, :dim].set(b_q.T)               # q block
    b2 = b2.at[rank:, 2 * dim:].set(b_v.T)           # v block (k stays zero)
    return {
        "w_qkv3": w_qkv3.astype(dtype),
        "a2": a2.astype(dtype),
        "b2": b2.astype(dtype),
        "scale": 0.8,                                # ParameterWrapper value
    }


def reference_forward(x, params):
    """Pure-JAX reference using the same (bf16-stored) parameters."""
    B, S, D = x.shape
    dtype = params["w_qkv3"].dtype
    x2 = x.reshape(-1, D).astype(dtype).astype(jnp.float32)
    w = params["w_qkv3"].astype(jnp.float32)
    a = params["a2"].astype(jnp.float32)
    b = params["b2"].astype(jnp.float32)
    s = jnp.float32(params["scale"])
    base = jnp.dot(x2, w, preferred_element_type=jnp.float32)
    delta = jnp.dot(jnp.dot(x2, a, preferred_element_type=jnp.float32), b,
                    preferred_element_type=jnp.float32)
    return (base + s * delta).reshape(B, S, w.shape[1])


# TODO(synk): LoRA.forward(loss=True) calls compute_ortho_loss(), which loads
# previously saved LoRA weights from disk; with task_id=0 it is identically 0,
# so it is omitted here (no file I/O allowed).

if __name__ == "__main__":
    B, S, D, R = 2, 8, 32, 4
    key = jax.random.PRNGKey(0)
    kx, kp = jax.random.split(key)
    x = jax.random.normal(kx, (B, S, D), jnp.float32)

    # 1) Module-faithful init (B = 0 -> LoRA delta is zero at init).
    params0 = init_params(kp, D, R, nonzero_b=False)
    out0 = jax.block_until_ready(lora_qkv_forward(x, params0))
    ref0 = reference_forward(x, params0)
    assert out0.shape == (B, S, 3 * D)
    assert jnp.allclose(out0, ref0, atol=2e-3, rtol=2e-3), \
        float(jnp.max(jnp.abs(out0 - ref0)))

    # 2) Nonzero B to exercise the low-rank update + scaling path.
    params1 = init_params(kp, D, R, nonzero_b=True)
    out1 = jax.block_until_ready(lora_qkv_forward(x, params1))
    ref1 = reference_forward(x, params1)
    assert jnp.allclose(out1, ref1, atol=2e-3, rtol=2e-3), \
        float(jnp.max(jnp.abs(out1 - ref1)))

    print("KERNEL_OK")
</pallas_src>

<mosaic_0001>
module attributes {stable_mosaic.version = 11 : i64} {
  func.func @_lora_qkv_kernel(%arg0: i32, %arg1: memref<1x1xf32, #tpu.memory_space<smem>>, %arg2: memref<16x32xbf16, #tpu.memory_space<vmem>>, %arg3: memref<32x96xbf16, #tpu.memory_space<vmem>>, %arg4: memref<32x8xbf16, #tpu.memory_space<vmem>>, %arg5: memref<8x96xbf16, #tpu.memory_space<vmem>>, %arg6: memref<16x96xf32, #tpu.memory_space<vmem>>) attributes {dimension_semantics = [#tpu.dimension_semantics<parallel>], iteration_bounds = array<i64: 1>, scalar_prefetch = 0 : i64, scratch_operands = 0 : i64, tpu.core_type = #tpu.core_type<tc>, window_params = [{transform_indices = @transform_0, window_bounds = array<i64: 1, 1>}, {transform_indices = @transform_1, window_bounds = array<i64: 16, 32>}, {pipeline_mode = #tpu.pipeline_mode<synchronous>, transform_indices = @transform_2, window_bounds = array<i64: 32, 96>}, {pipeline_mode = #tpu.pipeline_mode<synchronous>, transform_indices = @transform_3, window_bounds = array<i64: 32, 8>}, {pipeline_mode = #tpu.pipeline_mode<synchronous>, transform_indices = @transform_4, window_bounds = array<i64: 8, 96>}, {transform_indices = @transform_5, window_bounds = array<i64: 16, 96>}]} {
    %c0 = arith.constant 0 : index
    %c0_0 = arith.constant 0 : index
    %0 = vector.load %arg2[%c0, %c0_0] : memref<16x32xbf16, #tpu.memory_space<vmem>>, vector<16x32xbf16>
    %c0_1 = arith.constant 0 : index
    %c0_2 = arith.constant 0 : index
    %1 = memref.load %arg1[%c0_1, %c0_2] : memref<1x1xf32, #tpu.memory_space<smem>>
    %c0_3 = arith.constant 0 : index
    %c0_4 = arith.constant 0 : index
    %2 = vector.load %arg3[%c0_3, %c0_4] : memref<32x96xbf16, #tpu.memory_space<vmem>>, vector<32x96xbf16>
    %cst = arith.constant dense<0.000000e+00> : vector<16x96xf32>
    %3 = tpu.matmul %0, %2, %cst {dimension_numbers = #tpu.dot_dimension_numbers<[1], [0], [0], [1], [0, 0, 1, 1], [], []>} : vector<16x32xbf16>, vector<32x96xbf16>, vector<16x96xf32> -> vector<16x96xf32>
    %c0_5 = arith.constant 0 : index
    %c0_6 = arith.constant 0 : index
    %4 = vector.load %arg4[%c0_5, %c0_6] : memref<32x8xbf16, #tpu.memory_space<vmem>>, vector<32x8xbf16>
    %cst_7 = arith.constant dense<0.000000e+00> : vector<16x8xf32>
    %5 = tpu.matmul %0, %4, %cst_7 {dimension_numbers = #tpu.dot_dimension_numbers<[1], [0], [0], [1], [0, 0, 1, 1], [], []>} : vector<16x32xbf16>, vector<32x8xbf16>, vector<16x8xf32> -> vector<16x8xf32>
    %c0_8 = arith.constant 0 : index
    %c0_9 = arith.constant 0 : index
    %6 = vector.load %arg5[%c0_8, %c0_9] : memref<8x96xbf16, #tpu.memory_space<vmem>>, vector<8x96xbf16>
    %7 = arith.extf %6 : vector<8x96xbf16> to vector<8x96xf32>
    %cst_10 = arith.constant dense<0.000000e+00> : vector<16x96xf32>
    %8 = tpu.matmul %5, %7, %cst_10 {dimension_numbers = #tpu.dot_dimension_numbers<[1], [0], [0], [1], [0, 0, 1, 1], [], []>} : vector<16x8xf32>, vector<8x96xf32>, vector<16x96xf32> -> vector<16x96xf32>
    %9 = vector.broadcast %1 : f32 to vector<16x96xf32>
    %10 = arith.mulf %9, %8 : vector<16x96xf32>
    %11 = arith.addf %3, %10 : vector<16x96xf32>
    %c0_11 = arith.constant 0 : index
    %c0_12 = arith.constant 0 : index
    %12 = vector.load %arg6[%c0_11, %c0_12] : memref<16x96xf32, #tpu.memory_space<vmem>>, vector<16x96xf32>
    tpu.vector_store %arg6[%c0_11, %c0_12], %11 {strides = array<i32>} : memref<16x96xf32, #tpu.memory_space<vmem>>, vector<16x96xf32>,
    return
  }
  func.func @transform_0(%arg0: i32) -> (i32, i32) {
    %c0_i32 = arith.constant 0 : i32
    %c0_i32_0 = arith.constant 0 : i32
    %c0_i32_1 = arith.constant 0 : i32
    return %c0_i32, %c0_i32_0 : i32, i32
  }
  func.func @transform_1(%arg0: i32) -> (i32, i32) {
    %c0_i32 = arith.constant 0 : i32
    %c0_i32_0 = arith.constant 0 : i32
    return %arg0, %c0_i32 : i32, i32
  }
  func.func @transform_2(%arg0: i32) -> (i32, i32) {
    %c0_i32 = arith.constant 0 : i32
    %c0_i32_0 = arith.constant 0 : i32
    %c0_i32_1 = arith.constant 0 : i32
    return %c0_i32, %c0_i32_0 : i32, i32
  }
  func.func @transform_3(%arg0: i32) -> (i32, i32) {
    %c0_i32 = arith.constant 0 : i32
    %c0_i32_0 = arith.constant 0 : i32
    %c0_i32_1 = arith.constant 0 : i32
    return %c0_i32, %c0_i32_0 : i32, i32
  }
  func.func @transform_4(%arg0: i32) -> (i32, i32) {
    %c0_i32 = arith.constant 0 : i32
    %c0_i32_0 = arith.constant 0 : i32
    %c0_i32_1 = arith.constant 0 : i32
    return %c0_i32, %c0_i32_0 : i32, i32
  }
  func.func @transform_5(%arg0: i32) -> (i32, i32) {
    %c0_i32 = arith.constant 0 : i32
    %c0_i32_0 = arith.constant 0 : i32
    return %arg0, %c0_i32 : i32, i32
  }
}

</mosaic_0001>

<llo_original>
// kernel: tpu_custom_call.1
$region0: #{tpu_custom_call.1}
  #allocation0 [shape = 'u32[]', space=smem, size = 0x4, offset = 0x4, fixed_abs, tag = 'smem constant byte address 0x4 - core index']
  #allocation1 [shape = 'u32[144,128]{1,0:T(1,128)}', space=vmem, size = 0x12000, scoped, tag = 'internal scratch']
  #allocation2 [shape = 'f32[1,1]{1,0:T(1,128)S(6)}', space=smem, size = 0x200, scoped, tag = 'scoped memory for tpu_custom_call.1']
  %s0 = inlined_call_operand.<no memory space> [shape: f32[1,1], index: 0, kind: input, shape index: {}]
  %s1 = inlined_call_operand.hbm [shape: bf16[16,32], index: 1, kind: input, shape index: {}]
  %s2 = inlined_call_operand.hbm [shape: bf16[32,96], index: 2, kind: input, shape index: {}]
  %s3 = inlined_call_operand.hbm [shape: bf16[32,8], index: 3, kind: input, shape index: {}]
  %s4 = inlined_call_operand.hbm [shape: bf16[8,96], index: 4, kind: input, shape index: {}]
  %s5 = inlined_call_operand.hbm [shape: f32[16,96], index: 5, kind: output, shape index: {}]
  %s6 = sld [smem:[#allocation0]]
  $region46: #{tpu_custom_call.1} parent=0
    _
  %s8 = ssub.s32 1, %s6
  %s9 = scalar_select 0, %s8, %s6
  %10 = sst [smem:[#allocation2]] %s0
  $region1: #{tpu_custom_call.1} parent=0
    #allocation3 [shape = 'u8[4096]{0}', space=vmem, size = 0x1000, scoped, tag = 'input window, operand 1, single buffered']
    #allocation4 [shape = 's32[1]{0}', space=sflag, size = 0x4, scoped, tag = 'scoped memory for tpu_custom_call.1']
    #allocation5 [shape = 's32[1]{0}', space=sflag, size = 0x4, scoped, tag = 'scoped memory for tpu_custom_call.1']
    #allocation6 [shape = 'u8[8192]{0}', space=vmem, size = 0x2000, scoped, tag = 'input window, operand 2, single buffered']
    #allocation7 [shape = 's32[1]{0}', space=sflag, size = 0x4, scoped, tag = 'scoped memory for tpu_custom_call.1']
    #allocation8 [shape = 'u8[8192]{0}', space=vmem, size = 0x2000, scoped, tag = 'input window, operand 3, single buffered']
    #allocation9 [shape = 'u8[2048]{0}', space=vmem, size = 0x800, scoped, tag = 'input window, operand 4, single buffered']
    #allocation10 [shape = 's32[1]{0}', space=sflag, size = 0x4, scoped, tag = 'scoped memory for tpu_custom_call.1']
    #allocation11 [shape = 'u8[8192]{0}', space=vmem, size = 0x2000, scoped, tag = 'output window, operand 0, single buffered']
    %11 = vsyncpa [#allocation4], 0
    %12 = vsyncpa [#allocation7], 0
    %13 = vsyncpa [#allocation10], 0
    %14 = vsyncpa [#allocation5], 0
    // Predicated region
    $region2: #{tpu_custom_call.1} parent=1 // pred_check
      _
    $region3: #{tpu_custom_call.1} parent=1 // pred_check_branch
      %16 = sbr.rel (0) target = $region5
    $region4: #{tpu_custom_call.1} parent=1 // pred_region
      _
    $region5: #{tpu_custom_call.1} parent=1 // pred_fallthru
      _
    // Predicated region
    $region6: #{tpu_custom_call.1} parent=1 // pred_check
      _
    $region7: #{tpu_custom_call.1} parent=1 // pred_check_branch
      %18 = sbr.rel (0) target = $region9
    $region8: #{tpu_custom_call.1} parent=1 // pred_region
      %s20 = ssub.s32 128, 128
      %21 = vsyncadd [#allocation4], %s20
      %s22 = sshll.u32 [#allocation3], 4
      %s23 = int_to_ptr.vmem [resolvable:$true] %s22
      %28 = dma.hbm_to_vmem [thread:$0]  %s1, 128, %s23, [#allocation4], 64, 64, 4
    $region9: #{tpu_custom_call.1} parent=1 // pred_fallthru
      _
    // Predicated region
    $region10: #{tpu_custom_call.1} parent=1 // pred_check
      _
    $region11: #{tpu_custom_call.1} parent=1 // pred_check_branch
      %30 = sbr.rel (0) target = $region13
    $region12: #{tpu_custom_call.1} parent=1 // pred_region
      %s32 = ssub.s32 256, 256
      %33 = vsyncadd [#allocation7], %s32
      %s34 = sshll.u32 [#allocation6], 4
      %s35 = int_to_ptr.vmem [resolvable:$true] %s34
      %40 = dma.hbm_to_vmem [thread:$0]  %s2, 256, %s35, [#allocation7], 64, 64, 4
    $region13: #{tpu_custom_call.1} parent=1 // pred_fallthru
      _
    // Predicated region
    $region14: #{tpu_custom_call.1} parent=1 // pred_check
      _
    $region15: #{tpu_custom_call.1} parent=1 // pred_check_branch
      %42 = sbr.rel (0) target = $region17
    $region16: #{tpu_custom_call.1} parent=1 // pred_region
      %s44 = ssub.s32 256, 256
      %45 = vsyncadd [#allocation7], %s44
      %s46 = sshll.u32 [#allocation8], 4
      %s47 = int_to_ptr.vmem [resolvable:$true] %s46
      %52 = dma.hbm_to_vmem [thread:$0]  %s3, 256, %s47, [#allocation7], 64, 64, 4
    $region17: #{tpu_custom_call.1} parent=1 // pred_fallthru
      _
    // Predicated region
    $region18: #{tpu_custom_call.1} parent=1 // pred_check
      _
    $region19: #{tpu_custom_call.1} parent=1 // pred_check_branch
      %54 = sbr.rel (0) target = $region21
    $region20: #{tpu_custom_call.1} parent=1 // pred_region
      %s56 = ssub.s32 64, 64
      %57 = vsyncadd [#allocation10], %s56
      %s59 = sshll.u32 [#allocation9], 4
      %s60 = int_to_ptr.vmem [resolvable:$true] %s59
      %62 = dma.hbm_to_vmem [thread:$0]  %s4, 64, %s60, [#allocation10]
    $region21: #{tpu_custom_call.1} parent=1 // pred_fallthru
      _
    // Predicated region
    $region22: #{tpu_custom_call.1} parent=1 // pred_check
      _
    $region23: #{tpu_custom_call.1} parent=1 // pred_check_branch
      %64 = sbr.rel (0) target = $region25
    $region24: #{tpu_custom_call.1} parent=1 // pred_region
      %65 = dma.done [#allocation4], 128
    $region25: #{tpu_custom_call.1} parent=1 // pred_fallthru
      _
    // Predicated region
    $region26: #{tpu_custom_call.1} parent=1 // pred_check
      _
    $region27: #{tpu_custom_call.1} parent=1 // pred_check_branch
      %67 = sbr.rel (0) target = $region29
    $region28: #{tpu_custom_call.1} parent=1 // pred_region
      %68 = dma.done [#allocation7], 256
    $region29: #{tpu_custom_call.1} parent=1 // pred_fallthru
      _
    // Predicated region
    $region30: #{tpu_custom_call.1} parent=1 // pred_check
      _
    $region31: #{tpu_custom_call.1} parent=1 // pred_check_branch
      %70 = sbr.rel (0) target = $region33
    $region32: #{tpu_custom_call.1} parent=1 // pred_region
      %71 = dma.done [#allocation7], 256
    $region33: #{tpu_custom_call.1} parent=1 // pred_fallthru
      _
    // Predicated region
    $region34: #{tpu_custom_call.1} parent=1 // pred_check
      _
    $region35: #{tpu_custom_call.1} parent=1 // pred_check_branch
      %73 = sbr.rel (0) target = $region37
    $region36: #{tpu_custom_call.1} parent=1 // pred_region
      %74 = dma.done [#allocation10], 64
    $region37: #{tpu_custom_call.1} parent=1 // pred_fallthru
      _
    %v76 = vld [vmem:[#allocation3] sm:$0xf]
    %v77 = vld [vmem:[#allocation3 + $0x4] sm:$0xf]
    %s78 = sld [smem:[#allocation2]]
    %v79 = vld [vmem:[#allocation6] sm:$0xf]
    %v80 = vld [vmem:[#allocation6 + $0x4] sm:$0xf]
    %v81 = vld [vmem:[#allocation6 + $0x8] sm:$0xf]
    %v82 = vld [vmem:[#allocation6 + $0xc] sm:$0xf]
    %v83 = vld [vmem:[#allocation8] sm:$0xf]
    %v84 = vld [vmem:[#allocation8 + $0x4] sm:$0xf]
    %v85 = vld [vmem:[#allocation8 + $0x8] sm:$0xf]
    %v86 = vld [vmem:[#allocation8 + $0xc] sm:$0xf]
    %v89 = vunpack.c.l.b16 %v76
    %v90 = vunpack.c.l.b16 %v77
    %v91 = vpack.c.b16 %v90, %v89
    %v96 = vunpack.c.l.b16 %v83
    %v97 = vunpack.c.l.b16 %v84
    %v98 = vunpack.c.l.b16 %v85
    %v99 = vunpack.c.l.b16 %v86
    %v100 = vpack.c.b16 %v97, %v96
    %v101 = vpack.c.b16 %v99, %v98
    %vm104 = vcmask 261120
    %v106 = vsel %vm104, %v91, 0
    %108 = vmatprep.subr.bf16.mxu0 0
    %109 = vmatpush1.bf16.msra.mxu0 %v100
    %110 = vmatprep.subr.bf16.mxu0 0
    %111 = vmatpush1.bf16.msra.mxu0 %v101
    %112 = vmatprep.subr.bf16.mxu0 0
    %113 = vmatpush1.bf16.msra.mxu0 0
    %114 = vmatprep.subr.bf16.mxu0 0
    %115 = vmatpush1.bf16.msra.mxu0 0
    %116 = vmatprep.subr.bf16.mxu0 0
    %117 = vmatpush1.bf16.msra.mxu0 0
    %118 = vmatprep.subr.bf16.mxu0 0
    %119 = vmatpush1.bf16.msra.mxu0 0
    %120 = vmatprep.subr.bf16.mxu0 0
    %121 = vmatpush1.bf16.msra.mxu0 0
    %122 = vmatprep.subr.bf16.mxu0 0
    %123 = vmatpush1.bf16.msra.mxu0 0
    %124 = vmatprep.subr.bf16.mxu0 0
    %125 = vmatpush1.bf16.msra.mxu0 0
    %126 = vmatprep.subr.bf16.mxu0 0
    %127 = vmatpush1.bf16.msra.mxu0 0
    %128 = vmatprep.subr.bf16.mxu0 0
    %129 = vmatpush1.bf16.msra.mxu0 0
    %130 = vmatprep.subr.bf16.mxu0 0
    %131 = vmatpush1.bf16.msra.mxu0 0
    %132 = vmatprep.subr.bf16.mxu0 0
    %133 = vmatpush1.bf16.msra.mxu0 0
    %134 = vmatprep.subr.bf16.mxu0 0
    %135 = vmatpush1.bf16.msra.mxu0 0
    %136 = vmatprep.subr.bf16.mxu0 0
    %137 = vmatpush1.bf16.msra.mxu0 0
    %138 = vmatprep.subr.bf16.mxu0 0
    %139 = vmatpush1.bf16.msra.mxu0 0
    %140 = vmatprep.mubr.bf16.mxu0 0
    %141 = vmatmul.mubr.bf16.gmra.mrb[0].mxu0 %v106
    %v142 = vpop.f32.mrb[0].mxu0
    %v143 = vadd.f32 0.0, %v142
    %v144 = vpop.f32.mrb[0].mxu0
    %v145 = vpop.f32.mrb[0].mxu0
    %v146 = vadd.f32 0.0, %v145
    %v147 = vpop.f32.mrb[0].mxu0
    %148 = vdwg.mxu0
    %v149 = vld [vmem:[#allocation9] sm:$0xf]
    %v150 = vunpack.c.l.bf16 %v149
    %vm151 = vcmask 64512
    %v153 = vsel %vm151, %v143, 0
    %v156 = vsel %vm151, %v146, 0
    %158 = vmatprep.subr.mxu0 0.0
    %159 = vmatpush1.msra.mxu0 %v150
    %160 = vmatprep.subr.mxu0 0.0
    %161 = vmatpush1.msra.mxu0 0.0
    %162 = vmatprep.subr.mxu0 0.0
    %163 = vmatpush1.msra.mxu0 0.0
    %164 = vmatprep.subr.mxu0 0.0
    %165 = vmatpush1.msra.mxu0 0.0
    %166 = vmatprep.subr.mxu0 0.0
    %167 = vmatpush1.msra.mxu0 0.0
    %168 = vmatprep.subr.mxu0 0.0
    %169 = vmatpush1.msra.mxu0 0.0
    %170 = vmatprep.subr.mxu0 0.0
    %171 = vmatpush1.msra.mxu0 0.0
    %172 = vmatprep.subr.mxu0 0.0
    %173 = vmatpush1.msra.mxu0 0.0
    %174 = vmatprep.subr.mxu0 0.0
    %175 = vmatpush1.msra.mxu0 0.0
    %176 = vmatprep.subr.mxu0 0.0
    %177 = vmatpush1.msra.mxu0 0.0
    %178 = vmatprep.subr.mxu0 0.0
    %179 = vmatpush1.msra.mxu0 0.0
    %180 = vmatprep.subr.mxu0 0.0
    %181 = vmatpush1.msra.mxu0 0.0
    %182 = vmatprep.subr.mxu0 0.0
    %183 = vmatpush1.msra.mxu0 0.0
    %184 = vmatprep.subr.mxu0 0.0
    %185 = vmatpush1.msra.mxu0 0.0
    %186 = vmatprep.subr.mxu0 0.0
    %187 = vmatpush1.msra.mxu0 0.0
    %188 = vmatprep.subr.mxu0 0.0
    %189 = vmatpush1.msra.mxu0 0.0
    %190 = vmatprep.subr.mxu0 0.0
    %191 = vmatpush1.msra.mxu0 0.0
    %192 = vmatprep.subr.mxu0 0.0
    %193 = vmatpush1.msra.mxu0 0.0
    %194 = vmatprep.subr.mxu0 0.0
    %195 = vmatpush1.msra.mxu0 0.0
    %196 = vmatprep.subr.mxu0 0.0
    %197 = vmatpush1.msra.mxu0 0.0
    %198 = vmatprep.subr.mxu0 0.0
    %199 = vmatpush1.msra.mxu0 0.0
    %200 = vmatprep.subr.mxu0 0.0
    %201 = vmatpush1.msra.mxu0 0.0
    %202 = vmatprep.subr.mxu0 0.0
    %203 = vmatpush1.msra.mxu0 0.0
    %204 = vmatprep.subr.mxu0 0.0
    %205 = vmatpush1.msra.mxu0 0.0
    %206 = vmatprep.subr.mxu0 0.0
    %207 = vmatpush1.msra.mxu0 0.0
    %208 = vmatprep.subr.mxu0 0.0
    %209 = vmatpush1.msra.mxu0 0.0
    %210 = vmatprep.subr.mxu0 0.0
    %211 = vmatpush1.msra.mxu0 0.0
    %212 = vmatprep.subr.mxu0 0.0
    %213 = vmatpush1.msra.mxu0 0.0
    %214 = vmatprep.subr.mxu0 0.0
    %215 = vmatpush1.msra.mxu0 0.0
    %216 = vmatprep.subr.mxu0 0.0
    %217 = vmatpush1.msra.mxu0 0.0
    %218 = vmatprep.subr.mxu0 0.0
    %219 = vmatpush1.msra.mxu0 0.0
    %220 = vmatprep.subr.mxu0 0.0
    %221 = vmatpush1.msra.mxu0 0.0
    %222 = vmatprep.mubr.f32.mxu0 0.0
    %223 = vmatmul.mubr.f32.gmra.mrb[0].mxu0 %v153
    %v224 = vpop.f32.mrb[0].mxu0
    %v225 = vadd.f32 0.0, %v224
    %v226 = vpop.f32.mrb[0].mxu0
    %227 = vmatprep.mubr.f32.mxu0 0.0
    %228 = vmatmul.mubr.f32.gmra.mrb[0].mxu0 %v156
    %v229 = vpop.f32.mrb[0].mxu0
    %v230 = vadd.f32 0.0, %v229
    %v231 = vpop.f32.mrb[0].mxu0
    %232 = vdwg.mxu0
    %v233 = vstv %s78
    %v234 = vmul.f32 %v233, %v225
    %v235 = vmul.f32 %v233, %v230
    %v240 = vunpack.c.l.b16 %v79
    %v241 = vunpack.c.l.b16 %v80
    %v242 = vunpack.c.l.b16 %v81
    %v243 = vunpack.c.l.b16 %v82
    %v244 = vpack.c.b16 %v241, %v240
    %v245 = vpack.c.b16 %v243, %v242
    %248 = vmatprep.subr.bf16.mxu0 0
    %249 = vmatpush1.bf16.msra.mxu0 %v244
    %250 = vmatprep.subr.bf16.mxu0 0
    %251 = vmatpush1.bf16.msra.mxu0 %v245
    %252 = vmatprep.subr.bf16.mxu0 0
    %253 = vmatpush1.bf16.msra.mxu0 0
    %254 = vmatprep.subr.bf16.mxu0 0
    %255 = vmatpush1.bf16.msra.mxu0 0
    %256 = vmatprep.subr.bf16.mxu0 0
    %257 = vmatpush1.bf16.msra.mxu0 0
    %258 = vmatprep.subr.bf16.mxu0 0
    %259 = vmatpush1.bf16.msra.mxu0 0
    %260 = vmatprep.subr.bf16.mxu0 0
    %261 = vmatpush1.bf16.msra.mxu0 0
    %262 = vmatprep.subr.bf16.mxu0 0
    %263 = vmatpush1.bf16.msra.mxu0 0
    %264 = vmatprep.subr.bf16.mxu0 0
    %265 = vmatpush1.bf16.msra.mxu0 0
    %266 = vmatprep.subr.bf16.mxu0 0
    %267 = vmatpush1.bf16.msra.mxu0 0
    %268 = vmatprep.subr.bf16.mxu0 0
    %269 = vmatpush1.bf16.msra.mxu0 0
    %270 = vmatprep.subr.bf16.mxu0 0
    %271 = vmatpush1.bf16.msra.mxu0 0
    %272 = vmatprep.subr.bf16.mxu0 0
    %273 = vmatpush1.bf16.msra.mxu0 0
    %274 = vmatprep.subr.bf16.mxu0 0
    %275 = vmatpush1.bf16.msra.mxu0 0
    %276 = vmatprep.subr.bf16.mxu0 0
    %277 = vmatpush1.bf16.msra.mxu0 0
    %278 = vmatprep.subr.bf16.mxu0 0
    %279 = vmatpush1.bf16.msra.mxu0 0
    %280 = vmatprep.mubr.bf16.mxu0 0
    %281 = vmatmul.mubr.bf16.gmra.mrb[0].mxu0 %v106
    %v282 = vpop.f32.mrb[0].mxu0
    %v283 = vadd.f32 %v234, %v282
    %v284 = vpop.f32.mrb[0].mxu0
    %v285 = vpop.f32.mrb[0].mxu0
    %v286 = vadd.f32 %v235, %v285
    %v287 = vpop.f32.mrb[0].mxu0
    %288 = vdwg.mxu0
    %vm289 = vcmask 785408
    %290 = vst.msk [vmem:[#allocation11] sm:$0xff] %vm289, %v283
    %291 = vst.msk [vmem:[#allocation11 + $0x8] sm:$0xff] %vm289, %v286
    // Predicated region
    $region38: #{tpu_custom_call.1} parent=1 // pred_check
      _
    $region39: #{tpu_custom_call.1} parent=1 // pred_check_branch
      %293 = sbr.rel (0) target = $region41
    $region40: #{tpu_custom_call.1} parent=1 // pred_region
      %s295 = ssub.s32 256, 256
      %296 = vsyncadd [#allocation5], %s295
      %s297 = sshll.u32 [#allocation11], 4
      %s298 = int_to_ptr.vmem [resolvable:$true] %s297
      %303 = dma.vmem_to_hbm [thread:$0]  %s298, 256, %s5, [#allocation5], 128, 128, 8
    $region41: #{tpu_custom_call.1} parent=1 // pred_fallthru
      _
    // Predicated region
    $region42: #{tpu_custom_call.1} parent=1 // pred_check
      _
    $region43: #{tpu_custom_call.1} parent=1 // pred_check_branch
      %305 = sbr.rel (0) target = $region45
    $region44: #{tpu_custom_call.1} parent=1 // pred_region
      %306 = dma.done [#allocation5], 256
    $region45: #{tpu_custom_call.1} parent=1 // pred_fallthru
      _
    %307 = vsyncpa [#allocation4], 1
    %308 = vsyncpa [#allocation7], 1
    %309 = vsyncpa [#allocation10], 1
    %310 = vsyncpa [#allocation5], 1

</llo_original>
